<compile_context>
chip_gen: v7x
topology: tpu7x:2x2x1
jax: 0.10.0
libtpu: 0.0.40
codegen_flags: <defaults>
</compile_context>

<pallas_src>
import math

import jax
import jax.numpy as jnp
from jax.experimental import pallas as pl
from jax.experimental.pallas import tpu as pltpu

_LANES = 128
_NUM_CORES = 2              # megacore split on v7x; benign on single-TC chips
_DEFAULT_TILE_ROWS = 2048   # f32: 6 inputs x 2 bufs x 1 MiB = 12 MiB live
                            # (fits v5e's 16 MiB scoped default; use 4096 on
                            #  v6e/v7x for lower per-step overhead).


def _make_intensity_kernel(tr, per_core_steps, rows_valid, needs_mask):
    """Build the kernel; every closed-over value is a Python int / bool."""

    def kernel(a_ref, b_ref, c_ref, d_ref, e_ref, f_ref, out_ref, acc_ref):
        core = pl.program_id(0)
        step = pl.program_id(1)

        @pl.when(step == 0)
        def _init():
            acc_ref[...] = jnp.zeros_like(acc_ref)

        # Elementwise joint-max of the five source images (native dtype, VPU).
        joint = jnp.maximum(
            jnp.maximum(
                jnp.maximum(jnp.maximum(a_ref[...], b_ref[...]), c_ref[...]),
                d_ref[...],
            ),
            e_ref[...],
        )
        diff = jnp.abs(f_ref[...].astype(jnp.float32)
                       - joint.astype(jnp.float32))

        if needs_mask:
            # Logical (unclamped) row range of this grid point; rows past the
            # valid extent (ragged tail / duplicate clamped blocks) -> zero.
            row0 = (core * per_core_steps + step) * tr
            row_idx = jax.lax.broadcasted_iota(jnp.int32, diff.shape, 0)
            diff = jnp.where(row0 + row_idx < rows_valid, diff, 0.0)

        # Pure-VALU accumulation: fold the (tr,128) tile onto an (8,128)
        # accumulator; the cross-sublane/lane collapse happens in the wrapper.
        acc_ref[...] += diff.reshape(tr // 8, 8, _LANES).sum(axis=0)

        @pl.when(step == per_core_steps - 1)
        def _finalize():
            out_ref[...] = acc_ref[...]

    return kernel


def l_intensity(image_A, image_B, image_C, image_D, image_E, image_fused,
                tile_rows=_DEFAULT_TILE_ROWS):
    """L_Intensity loss: mean(|fused - max(A, B, C, D, E)|)."""
    imgs = (image_A, image_B, image_C, image_D, image_E, image_fused)
    total = math.prod(image_fused.shape)

    # Sublane granularity for the (8,128) block rule, per input dtype
    # (8 rows for 32-bit, 16 for 16-bit, 32 for 8-bit).
    granule = max(
        max(8, 8 * (4 // jnp.dtype(x.dtype).itemsize)) for x in imgs)

    # Lane-dense layout: (rows, 128), native dtype.  Pad only if total isn't
    # a multiple of 128 (or the input is smaller than one granule tile); the
    # ragged row tail is handled by in-kernel masking, never by padding.
    rows = max(pl.cdiv(total, _LANES), granule)
    padded_total = rows * _LANES

    def prep(x):
        x = x.reshape(-1)                           # native dtype, no copy
        if padded_total != total:                   # tiny zero pad, exact
            x = jnp.pad(x, (0, padded_total - total))
        return x.reshape(rows, _LANES)

    args = tuple(prep(x) for x in imgs)

    # Row tile: multiple of `granule`, never larger than the array extent.
    tr = min(tile_rows, rows)
    tr = max(granule, (tr // granule) * granule)

    steps = pl.cdiv(rows, tr)                       # total row-tiles
    per_core_steps = pl.cdiv(steps, _NUM_CORES)
    covered_rows = _NUM_CORES * per_core_steps * tr
    needs_mask = covered_rows != rows

    def in_idx(c, i):
        # Clamp so duplicated / out-of-range grid points re-read a valid
        # block (their contribution is masked to zero inside the kernel).
        return (jnp.minimum(c * per_core_steps + i, steps - 1), 0)

    kernel = _make_intensity_kernel(tr, per_core_steps, rows, needs_mask)

    partials = pl.pallas_call(
        kernel,
        out_shape=jax.ShapeDtypeStruct((_NUM_CORES * 8, _LANES), jnp.float32),
        grid=(_NUM_CORES, per_core_steps),
        in_specs=[pl.BlockSpec((tr, _LANES), in_idx)] * 6,
        out_specs=pl.BlockSpec((8, _LANES), lambda c, i: (c, 0)),
        scratch_shapes=[pltpu.VMEM((8, _LANES), jnp.float32)],
        compiler_params=pltpu.CompilerParams(
            dimension_semantics=("parallel", "arbitrary")),
    )(*args)

    # Tiny (16,128) cross-lane reduce + 1/N scale done outside the kernel.
    return jnp.sum(partials) / jnp.float32(total)


if __name__ == "__main__":
    key = jax.random.PRNGKey(0)
    N, C, H, W = 2, 4, 16, 16
    keys = jax.random.split(key, 6)
    imgs = [jax.random.uniform(k, (N, C, H, W), dtype=jnp.float32)
            for k in keys]
    image_A, image_B, image_C, image_D, image_E, image_fused = imgs

    loss = jax.jit(l_intensity)(image_A, image_B, image_C, image_D,
                                image_E, image_fused)
    loss = jax.block_until_ready(loss)

    # Pure-JAX reference.
    joint = jnp.maximum(
        jnp.maximum(jnp.maximum(jnp.maximum(image_A, image_B), image_C),
                    image_D),
        image_E,
    )
    ref = jnp.mean(jnp.abs(image_fused - joint))
    assert jnp.allclose(loss, ref, rtol=1e-5, atol=1e-5), (loss, ref)

    print("KERNEL_OK")
</pallas_src>

<mosaic_0001>
module attributes {stable_mosaic.version = 11 : i64} {
  func.func @kernel(%arg0: i32, %arg1: i32, %arg2: memref<16x128xf32, #tpu.memory_space<vmem>>, %arg3: memref<16x128xf32, #tpu.memory_space<vmem>>, %arg4: memref<16x128xf32, #tpu.memory_space<vmem>>, %arg5: memref<16x128xf32, #tpu.memory_space<vmem>>, %arg6: memref<16x128xf32, #tpu.memory_space<vmem>>, %arg7: memref<16x128xf32, #tpu.memory_space<vmem>>, %arg8: memref<8x128xf32, #tpu.memory_space<vmem>>, %arg9: memref<8x128xf32, #tpu.memory_space<vmem>>) attributes {dimension_semantics = [#tpu.dimension_semantics<parallel>, #tpu.dimension_semantics<arbitrary>], iteration_bounds = array<i64: 2, 1>, scalar_prefetch = 0 : i64, scratch_operands = 1 : i64, tpu.core_type = #tpu.core_type<tc>, window_params = [{transform_indices = @transform_0, window_bounds = array<i64: 16, 128>}, {transform_indices = @transform_1, window_bounds = array<i64: 16, 128>}, {transform_indices = @transform_2, window_bounds = array<i64: 16, 128>}, {transform_indices = @transform_3, window_bounds = array<i64: 16, 128>}, {transform_indices = @transform_4, window_bounds = array<i64: 16, 128>}, {transform_indices = @transform_5, window_bounds = array<i64: 16, 128>}, {transform_indices = @transform_6, window_bounds = array<i64: 8, 128>}]} {
    %c0_i32 = arith.constant 0 : i32
    %0 = arith.cmpi eq, %arg1, %c0_i32 : i32
    %1 = arith.extui %0 : i1 to i32
    %c0_i32_0 = arith.constant 0 : i32
    %2 = arith.cmpi ne, %1, %c0_i32_0 : i32
    scf.if %2 {
      %cst_20 = arith.constant 0.000000e+00 : f32
      %33 = vector.broadcast %cst_20 : f32 to vector<8x128xf32>
      %c0_21 = arith.constant 0 : index
      %c0_22 = arith.constant 0 : index
      %34 = vector.load %arg9[%c0_21, %c0_22] : memref<8x128xf32, #tpu.memory_space<vmem>>, vector<8x128xf32>
      tpu.vector_store %arg9[%c0_21, %c0_22], %33 {strides = array<i32>} : memref<8x128xf32, #tpu.memory_space<vmem>>, vector<8x128xf32>,
    } else {
    }
    %c0 = arith.constant 0 : index
    %c0_1 = arith.constant 0 : index
    %3 = vector.load %arg2[%c0, %c0_1] : memref<16x128xf32, #tpu.memory_space<vmem>>, vector<16x128xf32>
    %c0_2 = arith.constant 0 : index
    %c0_3 = arith.constant 0 : index
    %4 = vector.load %arg3[%c0_2, %c0_3] : memref<16x128xf32, #tpu.memory_space<vmem>>, vector<16x128xf32>
    %5 = arith.maximumf %3, %4 : vector<16x128xf32>
    %c0_4 = arith.constant 0 : index
    %c0_5 = arith.constant 0 : index
    %6 = vector.load %arg4[%c0_4, %c0_5] : memref<16x128xf32, #tpu.memory_space<vmem>>, vector<16x128xf32>
    %7 = arith.maximumf %5, %6 : vector<16x128xf32>
    %c0_6 = arith.constant 0 : index
    %c0_7 = arith.constant 0 : index
    %8 = vector.load %arg5[%c0_6, %c0_7] : memref<16x128xf32, #tpu.memory_space<vmem>>, vector<16x128xf32>
    %9 = arith.maximumf %7, %8 : vector<16x128xf32>
    %c0_8 = arith.constant 0 : index
    %c0_9 = arith.constant 0 : index
    %10 = vector.load %arg6[%c0_8, %c0_9] : memref<16x128xf32, #tpu.memory_space<vmem>>, vector<16x128xf32>
    %11 = arith.maximumf %9, %10 : vector<16x128xf32>
    %c0_10 = arith.constant 0 : index
    %c0_11 = arith.constant 0 : index
    %12 = vector.load %arg7[%c0_10, %c0_11] : memref<16x128xf32, #tpu.memory_space<vmem>>, vector<16x128xf32>
    %13 = arith.subf %12, %11 : vector<16x128xf32>
    %14 = math.absf %13 : vector<16x128xf32>
    %c1_i32 = arith.constant 1 : i32
    %15 = arith.muli %arg0, %c1_i32 : i32
    %16 = arith.addi %15, %arg1 : i32
    %c16_i32 = arith.constant 16 : i32
    %17 = arith.muli %16, %c16_i32 : i32
    %18 = tpu.iota {dimensions = array<i32: 0>} : vector<16x128xi32>
    %19 = vector.broadcast %17 : i32 to vector<16x128xi32>
    %20 = arith.addi %19, %18 : vector<16x128xi32>
    %c16_i32_12 = arith.constant 16 : i32
    %21 = vector.broadcast %c16_i32_12 : i32 to vector<16x128xi32>
    %22 = arith.cmpi slt, %20, %21 : vector<16x128xi32>
    %cst = arith.constant 0.000000e+00 : f32
    %23 = vector.broadcast %cst : f32 to vector<16x128xf32>
    %24 = arith.select %22, %14, %23 : vector<16x128xi1>, vector<16x128xf32>
    %c0_13 = arith.constant 0 : index
    %c0_14 = arith.constant 0 : index
    %25 = vector.load %arg9[%c0_13, %c0_14] : memref<8x128xf32, #tpu.memory_space<vmem>>, vector<8x128xf32>
    %26 = vector.shape_cast %24 : vector<16x128xf32> to vector<2x8x128xf32>
    %cst_15 = arith.constant dense<0.000000e+00> : vector<8x128xf32>
    %27 = vector.multi_reduction <add>, %26, %cst_15 [0] : vector<2x8x128xf32> to vector<8x128xf32>
    %28 = arith.addf %25, %27 : vector<8x128xf32>
    %c0_16 = arith.constant 0 : index
    %c0_17 = arith.constant 0 : index
    %29 = vector.load %arg9[%c0_16, %c0_17] : memref<8x128xf32, #tpu.memory_space<vmem>>, vector<8x128xf32>
    tpu.vector_store %arg9[%c0_16, %c0_17], %28 {strides = array<i32>} : memref<8x128xf32, #tpu.memory_space<vmem>>, vector<8x128xf32>,
    %c0_i32_18 = arith.constant 0 : i32
    %30 = arith.cmpi eq, %arg1, %c0_i32_18 : i32
    %31 = arith.extui %30 : i1 to i32
    %c0_i32_19 = arith.constant 0 : i32
    %32 = arith.cmpi ne, %31, %c0_i32_19 : i32
    scf.if %32 {
      %c0_20 = arith.constant 0 : index
      %c0_21 = arith.constant 0 : index
      %33 = vector.load %arg9[%c0_20, %c0_21] : memref<8x128xf32, #tpu.memory_space<vmem>>, vector<8x128xf32>
      %c0_22 = arith.constant 0 : index
      %c0_23 = arith.constant 0 : index
      %34 = vector.load %arg8[%c0_22, %c0_23] : memref<8x128xf32, #tpu.memory_space<vmem>>, vector<8x128xf32>
      tpu.vector_store %arg8[%c0_22, %c0_23], %33 {strides = array<i32>} : memref<8x128xf32, #tpu.memory_space<vmem>>, vector<8x128xf32>,
    } else {
    }
    return
  }
  func.func @transform_0(%arg0: i32, %arg1: i32) -> (i32, i32) {
    %c1_i32 = arith.constant 1 : i32
    %0 = arith.muli %arg0, %c1_i32 : i32
    %1 = arith.addi %0, %arg1 : i32
    %c0_i32 = arith.constant 0 : i32
    %2 = arith.minsi %1, %c0_i32 : i32
    %c0_i32_0 = arith.constant 0 : i32
    %c0_i32_1 = arith.constant 0 : i32
    return %2, %c0_i32_0 : i32, i32
  }
  func.func @transform_1(%arg0: i32, %arg1: i32) -> (i32, i32) {
    %c1_i32 = arith.constant 1 : i32
    %0 = arith.muli %arg0, %c1_i32 : i32
    %1 = arith.addi %0, %arg1 : i32
    %c0_i32 = arith.constant 0 : i32
    %2 = arith.minsi %1, %c0_i32 : i32
    %c0_i32_0 = arith.constant 0 : i32
    %c0_i32_1 = arith.constant 0 : i32
    return %2, %c0_i32_0 : i32, i32
  }
  func.func @transform_2(%arg0: i32, %arg1: i32) -> (i32, i32) {
    %c1_i32 = arith.constant 1 : i32
    %0 = arith.muli %arg0, %c1_i32 : i32
    %1 = arith.addi %0, %arg1 : i32
    %c0_i32 = arith.constant 0 : i32
    %2 = arith.minsi %1, %c0_i32 : i32
    %c0_i32_0 = arith.constant 0 : i32
    %c0_i32_1 = arith.constant 0 : i32
    return %2, %c0_i32_0 : i32, i32
  }
  func.func @transform_3(%arg0: i32, %arg1: i32) -> (i32, i32) {
    %c1_i32 = arith.constant 1 : i32
    %0 = arith.muli %arg0, %c1_i32 : i32
    %1 = arith.addi %0, %arg1 : i32
    %c0_i32 = arith.constant 0 : i32
    %2 = arith.minsi %1, %c0_i32 : i32
    %c0_i32_0 = arith.constant 0 : i32
    %c0_i32_1 = arith.constant 0 : i32
    return %2, %c0_i32_0 : i32, i32
  }
  func.func @transform_4(%arg0: i32, %arg1: i32) -> (i32, i32) {
    %c1_i32 = arith.constant 1 : i32
    %0 = arith.muli %arg0, %c1_i32 : i32
    %1 = arith.addi %0, %arg1 : i32
    %c0_i32 = arith.constant 0 : i32
    %2 = arith.minsi %1, %c0_i32 : i32
    %c0_i32_0 = arith.constant 0 : i32
    %c0_i32_1 = arith.constant 0 : i32
    return %2, %c0_i32_0 : i32, i32
  }
  func.func @transform_5(%arg0: i32, %arg1: i32) -> (i32, i32) {
    %c1_i32 = arith.constant 1 : i32
    %0 = arith.muli %arg0, %c1_i32 : i32
    %1 = arith.addi %0, %arg1 : i32
    %c0_i32 = arith.constant 0 : i32
    %2 = arith.minsi %1, %c0_i32 : i32
    %c0_i32_0 = arith.constant 0 : i32
    %c0_i32_1 = arith.constant 0 : i32
    return %2, %c0_i32_0 : i32, i32
  }
  func.func @transform_6(%arg0: i32, %arg1: i32) -> (i32, i32) {
    %c0_i32 = arith.constant 0 : i32
    %c0_i32_0 = arith.constant 0 : i32
    return %arg0, %c0_i32 : i32, i32
  }
}

</mosaic_0001>

<llo_original>
// kernel: l_intensity.1
$region0: #{l_intensity.1}
  #allocation0 [shape = 'u32[]', space=smem, size = 0x4, offset = 0x4, fixed_abs, tag = 'smem constant byte address 0x4 - core index']
  #allocation1 [shape = 'u32[144,128]{1,0:T(1,128)}', space=vmem, size = 0x12000, scoped, tag = 'internal scratch']
  #allocation2 [shape = 'f32[8,128]{1,0:T(8,128)}', space=vmem, size = 0x1000, scoped, tag = 'scratch operand']
  %s0 = inlined_call_operand.vmem [shape: f32[16,128], index: 0, kind: input, shape index: {}]
  %s1 = inlined_call_operand.vmem [shape: f32[16,128], index: 1, kind: input, shape index: {}]
  %s2 = inlined_call_operand.vmem [shape: f32[16,128], index: 2, kind: input, shape index: {}]
  %s3 = inlined_call_operand.vmem [shape: f32[16,128], index: 3, kind: input, shape index: {}]
  %s4 = inlined_call_operand.vmem [shape: f32[16,128], index: 4, kind: input, shape index: {}]
  %s5 = inlined_call_operand.vmem [shape: f32[16,128], index: 5, kind: input, shape index: {}]
  %s6 = inlined_call_operand.vmem [shape: f32[16,128], index: 6, kind: output, shape index: {}]
  %s7 = sld [smem:[#allocation0]]
  $region65: #{l_intensity.1} parent=0
    _
  %s9 = ssub.s32 1, %s7
  %s10 = scalar_select 0, %s9, %s7
  loop: start=0, step=1, limit=4
  $region2: #{l_intensity.1} parent=0 // loop_pre_header
    _
  $region3: #{l_intensity.1} parent=0 // loop_header
    %s12 = sphi 0, %s16
    %p13 = scmp.ge.s32.totalorder %s12, 4
    %s19 = sphi 0, %s31
    %s20 = sphi 0, %s27
    %s21 = sphi 0, %s19
    %s22 = sphi 0, %s20
    %s23 = sphi 0, %s21
    %s24 = sphi 0, %s22
    %s40 = sphi 0, %s42
    %s43 = sphi 0, %s40
    %s44 = sphi 0, %s43
    %s60 = sphi 0, %s44
    %s72 = sphi 0, %s74
    %s75 = sphi 0, %s72
    %s76 = sphi 0, %s75
    %s92 = sphi 0, %s76
    %s104 = sphi 0, %s106
    %s107 = sphi 0, %s104
    %s108 = sphi 0, %s107
    %s124 = sphi 0, %s108
    %s136 = sphi 0, %s138
    %s139 = sphi 0, %s136
    %s140 = sphi 0, %s139
    %s156 = sphi 0, %s140
    %s168 = sphi 0, %s170
    %s171 = sphi 0, %s168
    %s172 = sphi 0, %s171
    %s188 = sphi 0, %s172
    %s200 = sphi 0, %s202
    %s203 = sphi 0, %s200
    %s204 = sphi 0, %s203
    %s220 = sphi 0, %s204
    %s226 = sphi 0, %s228
    %s229 = sphi 0, %s226
    %s230 = sphi 0, %s229
    %s246 = sphi 0, %s230
  $region4: #{l_intensity.1} parent=0 // loop_header_branch
    %15 = sbr.rel (%p13) target = $region8
  $region5: #{l_intensity.1} parent=0 // loop_body
    %s17 = ssub.s32 %s12, 1
    %s18 = ssub.s32 %s12, 2
    %s25 = sadd.s32 1, %s20
    %p26 = scmp.ge.s32.totalorder %s25, 1
    %s27 = scalar_select %p26, 0, %s25
    %s28 = sadd.s32 1, %s19
    %s29 = scalar_select %p26, %s28, %s19
    %p30 = scmp.ge.s32.totalorder %s29, 2
    %s31 = scalar_select %p30, 0, %s29
    %s32 = sadd.s32 %s19, %s20
    %p33 = scmp.lt.s32.totalorder %s32, 0
    %s34 = scalar_select %p33, %s32, 0
    %s35 = sadd.s32 %s31, %s27
    %p36 = scmp.lt.s32.totalorder %s35, 0
    %s37 = scalar_select %p36, %s35, 0
    %s38 = ssub.s32 %s34, %s37
    %p39 = scmp.eq.s32.totalorder %s38, 0
    %s41 = sadd.s32 %s40, 1
    %s42 = scalar_select %p39, %s40, %s41
    %p45 = pneg %p39
    %p46 = scmp.eq.s32.totalorder %s12, 1
    %p47 = por %p45, %p46
    %p48 = scmp.ne.s32.totalorder %s40, %s43
    %p49 = scmp.eq.s32.totalorder %s12, 0
    %p50 = por %p48, %p49
    %p51 = scmp.ne.s32.totalorder %s40, %s43
    %p52 = scmp.eq.s32.totalorder %s17, 1
    %p53 = por %p51, %p52
    %p54 = scmp.ne.s32.totalorder %s43, %s44
    %p55 = scmp.eq.s32.totalorder %s17, 0
    %p56 = por %p54, %p55
    %p57 = scmp.ne.s32.totalorder %s43, %s44
    %p58 = scmp.eq.s32.totalorder %s18, 1
    %p59 = por %p57, %p58
    %p61 = scmp.ne.s32.totalorder %s44, %s60
    %p62 = scmp.eq.s32.totalorder %s18, 0
    %p63 = por %p61, %p62
    %s64 = sadd.s32 %s19, %s20
    %p65 = scmp.lt.s32.totalorder %s64, 0
    %s66 = scalar_select %p65, %s64, 0
    %s67 = sadd.s32 %s31, %s27
    %p68 = scmp.lt.s32.totalorder %s67, 0
    %s69 = scalar_select %p68, %s67, 0
    %s70 = ssub.s32 %s66, %s69
    %p71 = scmp.eq.s32.totalorder %s70, 0
    %s73 = sadd.s32 %s72, 1
    %s74 = scalar_select %p71, %s72, %s73
    %p77 = pneg %p71
    %p78 = scmp.eq.s32.totalorder %s12, 1
    %p79 = por %p77, %p78
    %p80 = scmp.ne.s32.totalorder %s72, %s75
    %p81 = scmp.eq.s32.totalorder %s12, 0
    %p82 = por %p80, %p81
    %p83 = scmp.ne.s32.totalorder %s72, %s75
    %p84 = scmp.eq.s32.totalorder %s17, 1
    %p85 = por %p83, %p84
    %p86 = scmp.ne.s32.totalorder %s75, %s76
    %p87 = scmp.eq.s32.totalorder %s17, 0
    %p88 = por %p86, %p87
    %p89 = scmp.ne.s32.totalorder %s75, %s76
    %p90 = scmp.eq.s32.totalorder %s18, 1
    %p91 = por %p89, %p90
    %p93 = scmp.ne.s32.totalorder %s76, %s92
    %p94 = scmp.eq.s32.totalorder %s18, 0
    %p95 = por %p93, %p94
    %s96 = sadd.s32 %s19, %s20
    %p97 = scmp.lt.s32.totalorder %s96, 0
    %s98 = scalar_select %p97, %s96, 0
    %s99 = sadd.s32 %s31, %s27
    %p100 = scmp.lt.s32.totalorder %s99, 0
    %s101 = scalar_select %p100, %s99, 0
    %s102 = ssub.s32 %s98, %s101
    %p103 = scmp.eq.s32.totalorder %s102, 0
    %s105 = sadd.s32 %s104, 1
    %s106 = scalar_select %p103, %s104, %s105
    %p109 = pneg %p103
    %p110 = scmp.eq.s32.totalorder %s12, 1
    %p111 = por %p109, %p110
    %p112 = scmp.ne.s32.totalorder %s104, %s107
    %p113 = scmp.eq.s32.totalorder %s12, 0
    %p114 = por %p112, %p113
    %p115 = scmp.ne.s32.totalorder %s104, %s107
    %p116 = scmp.eq.s32.totalorder %s17, 1
    %p117 = por %p115, %p116
    %p118 = scmp.ne.s32.totalorder %s107, %s108
    %p119 = scmp.eq.s32.totalorder %s17, 0
    %p120 = por %p118, %p119
    %p121 = scmp.ne.s32.totalorder %s107, %s108
    %p122 = scmp.eq.s32.totalorder %s18, 1
    %p123 = por %p121, %p122
    %p125 = scmp.ne.s32.totalorder %s108, %s124
    %p126 = scmp.eq.s32.totalorder %s18, 0
    %p127 = por %p125, %p126
    %s128 = sadd.s32 %s19, %s20
    %p129 = scmp.lt.s32.totalorder %s128, 0
    %s130 = scalar_select %p129, %s128, 0
    %s131 = sadd.s32 %s31, %s27
    %p132 = scmp.lt.s32.totalorder %s131, 0
    %s133 = scalar_select %p132, %s131, 0
    %s134 = ssub.s32 %s130, %s133
    %p135 = scmp.eq.s32.totalorder %s134, 0
    %s137 = sadd.s32 %s136, 1
    %s138 = scalar_select %p135, %s136, %s137
    %p141 = pneg %p135
    %p142 = scmp.eq.s32.totalorder %s12, 1
    %p143 = por %p141, %p142
    %p144 = scmp.ne.s32.totalorder %s136, %s139
    %p145 = scmp.eq.s32.totalorder %s12, 0
    %p146 = por %p144, %p145
    %p147 = scmp.ne.s32.totalorder %s136, %s139
    %p148 = scmp.eq.s32.totalorder %s17, 1
    %p149 = por %p147, %p148
    %p150 = scmp.ne.s32.totalorder %s139, %s140
    %p151 = scmp.eq.s32.totalorder %s17, 0
    %p152 = por %p150, %p151
    %p153 = scmp.ne.s32.totalorder %s139, %s140
    %p154 = scmp.eq.s32.totalorder %s18, 1
    %p155 = por %p153, %p154
    %p157 = scmp.ne.s32.totalorder %s140, %s156
    %p158 = scmp.eq.s32.totalorder %s18, 0
    %p159 = por %p157, %p158
    %s160 = sadd.s32 %s19, %s20
    %p161 = scmp.lt.s32.totalorder %s160, 0
    %s162 = scalar_select %p161, %s160, 0
    %s163 = sadd.s32 %s31, %s27
    %p164 = scmp.lt.s32.totalorder %s163, 0
    %s165 = scalar_select %p164, %s163, 0
    %s166 = ssub.s32 %s162, %s165
    %p167 = scmp.eq.s32.totalorder %s166, 0
    %s169 = sadd.s32 %s168, 1
    %s170 = scalar_select %p167, %s168, %s169
    %p173 = pneg %p167
    %p174 = scmp.eq.s32.totalorder %s12, 1
    %p175 = por %p173, %p174
    %p176 = scmp.ne.s32.totalorder %s168, %s171
    %p177 = scmp.eq.s32.totalorder %s12, 0
    %p178 = por %p176, %p177
    %p179 = scmp.ne.s32.totalorder %s168, %s171
    %p180 = scmp.eq.s32.totalorder %s17, 1
    %p181 = por %p179, %p180
    %p182 = scmp.ne.s32.totalorder %s171, %s172
    %p183 = scmp.eq.s32.totalorder %s17, 0
    %p184 = por %p182, %p183
    %p185 = scmp.ne.s32.totalorder %s171, %s172
    %p186 = scmp.eq.s32.totalorder %s18, 1
    %p187 = por %p185, %p186
    %p189 = scmp.ne.s32.totalorder %s172, %s188
    %p190 = scmp.eq.s32.totalorder %s18, 0
    %p191 = por %p189, %p190
    %s192 = sadd.s32 %s19, %s20
    %p193 = scmp.lt.s32.totalorder %s192, 0
    %s194 = scalar_select %p193, %s192, 0
    %s195 = sadd.s32 %s31, %s27
    %p196 = scmp.lt.s32.totalorder %s195, 0
    %s197 = scalar_select %p196, %s195, 0
    %s198 = ssub.s32 %s194, %s197
    %p199 = scmp.eq.s32.totalorder %s198, 0
    %s201 = sadd.s32 %s200, 1
    %s202 = scalar_select %p199, %s200, %s201
    %p205 = pneg %p199
    %p206 = scmp.eq.s32.totalorder %s12, 1
    %p207 = por %p205, %p206
    %p208 = scmp.ne.s32.totalorder %s200, %s203
    %p209 = scmp.eq.s32.totalorder %s12, 0
    %p210 = por %p208, %p209
    %p211 = scmp.ne.s32.totalorder %s200, %s203
    %p212 = scmp.eq.s32.totalorder %s17, 1
    %p213 = por %p211, %p212
    %p214 = scmp.ne.s32.totalorder %s203, %s204
    %p215 = scmp.eq.s32.totalorder %s17, 0
    %p216 = por %p214, %p215
    %p217 = scmp.ne.s32.totalorder %s203, %s204
    %p218 = scmp.eq.s32.totalorder %s18, 1
    %p219 = por %p217, %p218
    %p221 = scmp.ne.s32.totalorder %s204, %s220
    %p222 = scmp.eq.s32.totalorder %s18, 0
    %p223 = por %p221, %p222
    %s224 = ssub.s32 %s19, %s31
    %p225 = scmp.eq.s32.totalorder %s224, 0
    %s227 = sadd.s32 %s226, 1
    %s228 = scalar_select %p225, %s226, %s227
    %p231 = pneg %p225
    %p232 = scmp.eq.s32.totalorder %s12, 1
    %p233 = por %p231, %p232
    %p234 = scmp.ne.s32.totalorder %s226, %s229
    %p235 = scmp.eq.s32.totalorder %s12, 0
    %p236 = por %p234, %p235
    %p237 = scmp.ne.s32.totalorder %s226, %s229
    %p238 = scmp.eq.s32.totalorder %s17, 1
    %p239 = por %p237, %p238
    %p240 = scmp.ne.s32.totalorder %s229, %s230
    %p241 = scmp.eq.s32.totalorder %s17, 0
    %p242 = por %p240, %p241
    %p243 = scmp.ne.s32.totalorder %s229, %s230
    %p244 = scmp.eq.s32.totalorder %s18, 1
    %p245 = por %p243, %p244
    %p247 = scmp.ne.s32.totalorder %s230, %s246
    %p248 = scmp.eq.s32.totalorder %s18, 0
    %p249 = por %p247, %p248
    %p250 = scmp.le.s32.totalorder 1, %s12
    %p251 = scmp.lt.s32.totalorder %s12, 3
    %p252 = pnand %p250, %p251
    %p253 = pneg %p252
    // Predicated region
    $region9: #{l_intensity.1} parent=5 // pred_check
      _
    $region10: #{l_intensity.1} parent=5 // pred_check_branch
      %255 = sbr.rel (%p252) target = $region12
    $region11: #{l_intensity.1} parent=5 // pred_region
      %s256 = ssub.s32 %s12, 1
    $region12: #{l_intensity.1} parent=5 // pred_fallthru
      _
    %p257 = scmp.lt.s32.totalorder %s12, 2
    // Predicated region
    $region13: #{l_intensity.1} parent=5 // pred_check
      %p258 = pneg %p257
    $region14: #{l_intensity.1} parent=5 // pred_check_branch
      %260 = sbr.rel (%p258) target = $region16
    $region15: #{l_intensity.1} parent=5 // pred_region
      // Predicated region
      $region17: #{l_intensity.1} parent=15 // pred_check
        %p261 = pneg %p50
      $region18: #{l_intensity.1} parent=15 // pred_check_branch
        %263 = sbr.rel (%p261) target = $region20
      $region19: #{l_intensity.1} parent=15 // pred_region
        %s264 = sadd.s32 %s19, %s20
        %p265 = scmp.lt.s32.totalorder %s264, 0
        %s266 = scalar_select %p265, %s264, 0
        %s267 = smul.u32 2, %s266
        %p268 = scmp.lt.s32.totalorder %s267, 1
        %s269 = scalar_select %p268, %s267, 1
        %s270 = smul.addr %s269, 8
        %s271 = scalar_lea.vmem %s0, %s270
        %s272 = sadd.s32 %s19, %s20
        %p273 = scmp.lt.s32.totalorder %s272, 0
        %s274 = scalar_select %p273, %s272, 0
        %s275 = smul.u32 2, %s274
      $region20: #{l_intensity.1} parent=15 // pred_fallthru
        _
      // Predicated region
      $region21: #{l_intensity.1} parent=15 // pred_check
        %p276 = pneg %p82
      $region22: #{l_intensity.1} parent=15 // pred_check_branch
        %278 = sbr.rel (%p276) target = $region24
      $region23: #{l_intensity.1} parent=15 // pred_region
        %s279 = sadd.s32 %s19, %s20
        %p280 = scmp.lt.s32.totalorder %s279, 0
        %s281 = scalar_select %p280, %s279, 0
        %s282 = smul.u32 2, %s281
        %p283 = scmp.lt.s32.totalorder %s282, 1
        %s284 = scalar_select %p283, %s282, 1
        %s285 = smul.addr %s284, 8
        %s286 = scalar_lea.vmem %s1, %s285
        %s287 = sadd.s32 %s19, %s20
        %p288 = scmp.lt.s32.totalorder %s287, 0
        %s289 = scalar_select %p288, %s287, 0
        %s290 = smul.u32 2, %s289
      $region24: #{l_intensity.1} parent=15 // pred_fallthru
        _
      // Predicated region
      $region25: #{l_intensity.1} parent=15 // pred_check
        %p291 = pneg %p114
      $region26: #{l_intensity.1} parent=15 // pred_check_branch
        %293 = sbr.rel (%p291) target = $region28
      $region27: #{l_intensity.1} parent=15 // pred_region
        %s294 = sadd.s32 %s19, %s20
        %p295 = scmp.lt.s32.totalorder %s294, 0
        %s296 = scalar_select %p295, %s294, 0
        %s297 = smul.u32 2, %s296
        %p298 = scmp.lt.s32.totalorder %s297, 1
        %s299 = scalar_select %p298, %s297, 1
        %s300 = smul.addr %s299, 8
        %s301 = scalar_lea.vmem %s2, %s300
        %s302 = sadd.s32 %s19, %s20
        %p303 = scmp.lt.s32.totalorder %s302, 0
        %s304 = scalar_select %p303, %s302, 0
        %s305 = smul.u32 2, %s304
      $region28: #{l_intensity.1} parent=15 // pred_fallthru
        _
      // Predicated region
      $region29: #{l_intensity.1} parent=15 // pred_check
        %p306 = pneg %p146
      $region30: #{l_intensity.1} parent=15 // pred_check_branch
        %308 = sbr.rel (%p306) target = $region32
      $region31: #{l_intensity.1} parent=15 // pred_region
        %s309 = sadd.s32 %s19, %s20
        %p310 = scmp.lt.s32.totalorder %s309, 0
        %s311 = scalar_select %p310, %s309, 0
        %s312 = smul.u32 2, %s311
        %p313 = scmp.lt.s32.totalorder %s312, 1
        %s314 = scalar_select %p313, %s312, 1
        %s315 = smul.addr %s314, 8
        %s316 = scalar_lea.vmem %s3, %s315
        %s317 = sadd.s32 %s19, %s20
        %p318 = scmp.lt.s32.totalorder %s317, 0
        %s319 = scalar_select %p318, %s317, 0
        %s320 = smul.u32 2, %s319
      $region32: #{l_intensity.1} parent=15 // pred_fallthru
        _
      // Predicated region
      $region33: #{l_intensity.1} parent=15 // pred_check
        %p321 = pneg %p178
      $region34: #{l_intensity.1} parent=15 // pred_check_branch
        %323 = sbr.rel (%p321) target = $region36
      $region35: #{l_intensity.1} parent=15 // pred_region
        %s324 = sadd.s32 %s19, %s20
        %p325 = scmp.lt.s32.totalorder %s324, 0
        %s326 = scalar_select %p325, %s324, 0
        %s327 = smul.u32 2, %s326
        %p328 = scmp.lt.s32.totalorder %s327, 1
        %s329 = scalar_select %p328, %s327, 1
        %s330 = smul.addr %s329, 8
        %s331 = scalar_lea.vmem %s4, %s330
        %s332 = sadd.s32 %s19, %s20
        %p333 = scmp.lt.s32.totalorder %s332, 0
        %s334 = scalar_select %p333, %s332, 0
        %s335 = smul.u32 2, %s334
      $region36: #{l_intensity.1} parent=15 // pred_fallthru
        _
      // Predicated region
      $region37: #{l_intensity.1} parent=15 // pred_check
        %p336 = pneg %p210
      $region38: #{l_intensity.1} parent=15 // pred_check_branch
        %338 = sbr.rel (%p336) target = $region40
      $region39: #{l_intensity.1} parent=15 // pred_region
        %s339 = sadd.s32 %s19, %s20
        %p340 = scmp.lt.s32.totalorder %s339, 0
        %s341 = scalar_select %p340, %s339, 0
        %s342 = smul.u32 2, %s341
        %p343 = scmp.lt.s32.totalorder %s342, 1
        %s344 = scalar_select %p343, %s342, 1
        %s345 = smul.addr %s344, 8
        %s346 = scalar_lea.vmem %s5, %s345
        %s347 = sadd.s32 %s19, %s20
        %p348 = scmp.lt.s32.totalorder %s347, 0
        %s349 = scalar_select %p348, %s347, 0
        %s350 = smul.u32 2, %s349
      $region40: #{l_intensity.1} parent=15 // pred_fallthru
        _
    $region16: #{l_intensity.1} parent=5 // pred_fallthru
      _
    %p351 = scmp.le.s32.totalorder 1, %s12
    %p352 = scmp.lt.s32.totalorder %s12, 3
    %p353 = pnand %p351, %p352
    %p354 = pneg %p353
    // Predicated region
    $region41: #{l_intensity.1} parent=5 // pred_check
      _
    $region42: #{l_intensity.1} parent=5 // pred_check_branch
      %356 = sbr.rel (%p353) target = $region44
    $region43: #{l_intensity.1} parent=5 // pred_region
      %s357 = ssub.s32 %s12, 1
      %s358 = sadd.s32 %s21, %s22
      %p359 = scmp.lt.s32.totalorder %s358, 0
      %s360 = scalar_select %p359, %s358, 0
      %s361 = smul.u32 2, %s360
      %p362 = scmp.lt.s32.totalorder %s361, 1
      %s363 = scalar_select %p362, %s361, 1
      %s364 = smul.addr %s363, 8
      %s365 = scalar_lea.vmem %s0, %s364
      %p366 = pneg %p56
      %p367 = pneg %p53
      %s368 = sadd.s32 %s21, %s22
      %p369 = scmp.lt.s32.totalorder %s368, 0
      %s370 = scalar_select %p369, %s368, 0
      %s371 = smul.u32 2, %s370
      %p372 = scmp.lt.s32.totalorder %s371, 1
      %s373 = scalar_select %p372, %s371, 1
      %s374 = smul.addr %s373, 8
      %s375 = scalar_lea.vmem %s1, %s374
      %p376 = pneg %p88
      %p377 = pneg %p85
      %s378 = sadd.s32 %s21, %s22
      %p379 = scmp.lt.s32.totalorder %s378, 0
      %s380 = scalar_select %p379, %s378, 0
      %s381 = smul.u32 2, %s380
      %p382 = scmp.lt.s32.totalorder %s381, 1
      %s383 = scalar_select %p382, %s381, 1
      %s384 = smul.addr %s383, 8
      %s385 = scalar_lea.vmem %s2, %s384
      %p386 = pneg %p120
      %p387 = pneg %p117
      %s388 = sadd.s32 %s21, %s22
      %p389 = scmp.lt.s32.totalorder %s388, 0
      %s390 = scalar_select %p389, %s388, 0
      %s391 = smul.u32 2, %s390
      %p392 = scmp.lt.s32.totalorder %s391, 1
      %s393 = scalar_select %p392, %s391, 1
      %s394 = smul.addr %s393, 8
      %s395 = scalar_lea.vmem %s3, %s394
      %p396 = pneg %p152
      %p397 = pneg %p149
      %s398 = sadd.s32 %s21, %s22
      %p399 = scmp.lt.s32.totalorder %s398, 0
      %s400 = scalar_select %p399, %s398, 0
      %s401 = smul.u32 2, %s400
      %p402 = scmp.lt.s32.totalorder %s401, 1
      %s403 = scalar_select %p402, %s401, 1
      %s404 = smul.addr %s403, 8
      %s405 = scalar_lea.vmem %s4, %s404
      %p406 = pneg %p184
      %p407 = pneg %p181
      %s408 = sadd.s32 %s21, %s22
      %p409 = scmp.lt.s32.totalorder %s408, 0
      %s410 = scalar_select %p409, %s408, 0
      %s411 = smul.u32 2, %s410
      %p412 = scmp.lt.s32.totalorder %s411, 1
      %s413 = scalar_select %p412, %s411, 1
      %s414 = smul.addr %s413, 8
      %s415 = scalar_lea.vmem %s5, %s414
      %p416 = pneg %p216
      %p417 = pneg %p213
      %p418 = pneg %p242
      %p419 = pneg %p239
      %p420 = scmp.lt.s32.totalorder %s21, 1
      %s421 = scalar_select %p420, %s21, 1
      %s422 = smul.addr %s421, 8
      %s423 = scalar_lea.vmem %s6, %s422
      %s424 = sadd.s32 %s21, %s22
      %p425 = scmp.lt.s32.totalorder %s424, 0
      %s426 = scalar_select %p425, %s424, 0
      %s427 = smul.u32 2, %s426
      %p428 = scmp.lt.s32.totalorder %s427, 1
      %s429 = scalar_select %p428, %s427, 1
      %s430 = smul.addr %s429, 8
      %s431 = scalar_lea.vmem %s0, %s430
      %s432 = sadd.s32 %s21, %s22
      %p433 = scmp.lt.s32.totalorder %s432, 0
      %s434 = scalar_select %p433, %s432, 0
      %s435 = smul.u32 2, %s434
      %s436 = sadd.s32 %s21, %s22
      %p437 = scmp.lt.s32.totalorder %s436, 0
      %s438 = scalar_select %p437, %s436, 0
      %s439 = smul.u32 2, %s438
      %p440 = scmp.lt.s32.totalorder %s439, 1
      %s441 = scalar_select %p440, %s439, 1
      %s442 = smul.addr %s441, 8
      %s443 = scalar_lea.vmem %s1, %s442
      %s444 = sadd.s32 %s21, %s22
      %p445 = scmp.lt.s32.totalorder %s444, 0
      %s446 = scalar_select %p445, %s444, 0
      %s447 = smul.u32 2, %s446
      %s448 = sadd.s32 %s21, %s22
      %p449 = scmp.lt.s32.totalorder %s448, 0
      %s450 = scalar_select %p449, %s448, 0
      %s451 = smul.u32 2, %s450
      %p452 = scmp.lt.s32.totalorder %s451, 1
      %s453 = scalar_select %p452, %s451, 1
      %s454 = smul.addr %s453, 8
      %s455 = scalar_lea.vmem %s2, %s454
      %s456 = sadd.s32 %s21, %s22
      %p457 = scmp.lt.s32.totalorder %s456, 0
      %s458 = scalar_select %p457, %s456, 0
      %s459 = smul.u32 2, %s458
      %s460 = sadd.s32 %s21, %s22
      %p461 = scmp.lt.s32.totalorder %s460, 0
      %s462 = scalar_select %p461, %s460, 0
      %s463 = smul.u32 2, %s462
      %p464 = scmp.lt.s32.totalorder %s463, 1
      %s465 = scalar_select %p464, %s463, 1
      %s466 = smul.addr %s465, 8
      %s467 = scalar_lea.vmem %s3, %s466
      %s468 = sadd.s32 %s21, %s22
      %p469 = scmp.lt.s32.totalorder %s468, 0
      %s470 = scalar_select %p469, %s468, 0
      %s471 = smul.u32 2, %s470
      %s472 = sadd.s32 %s21, %s22
      %p473 = scmp.lt.s32.totalorder %s472, 0
      %s474 = scalar_select %p473, %s472, 0
      %s475 = smul.u32 2, %s474
      %p476 = scmp.lt.s32.totalorder %s475, 1
      %s477 = scalar_select %p476, %s475, 1
      %s478 = smul.addr %s477, 8
      %s479 = scalar_lea.vmem %s4, %s478
      %s480 = sadd.s32 %s21, %s22
      %p481 = scmp.lt.s32.totalorder %s480, 0
      %s482 = scalar_select %p481, %s480, 0
      %s483 = smul.u32 2, %s482
      %s484 = sadd.s32 %s21, %s22
      %p485 = scmp.lt.s32.totalorder %s484, 0
      %s486 = scalar_select %p485, %s484, 0
      %s487 = smul.u32 2, %s486
      %p488 = scmp.lt.s32.totalorder %s487, 1
      %s489 = scalar_select %p488, %s487, 1
      %s490 = smul.addr %s489, 8
      %s491 = scalar_lea.vmem %s5, %s490
      %s492 = sadd.s32 %s21, %s22
      %p493 = scmp.lt.s32.totalorder %s492, 0
      %s494 = scalar_select %p493, %s492, 0
      %s495 = smul.u32 2, %s494
      %p496 = scmp.lt.s32.totalorder %s21, 1
      %s497 = scalar_select %p496, %s21, 1
      %s498 = smul.addr %s497, 8
      %s499 = scalar_lea.vmem %s6, %s498
      %p500 = scmp.eq.s32.totalorder %s22, 0
      // Predicated region
      $region45: #{l_intensity.1} parent=43 // pred_check
        %p501 = pneg %p500
      $region46: #{l_intensity.1} parent=43 // pred_check_branch
        %503 = sbr.rel (%p501) target = $region48
      $region47: #{l_intensity.1} parent=43 // pred_region
        %504 = vst [vmem:[#allocation2] sm:$0xff] 0.0
      $region48: #{l_intensity.1} parent=43 // pred_fallthru
        _
      %v505 = vld [vmem:[%s431] sm:$0xff]
      %v506 = vld [vmem:[%s431 + $0x8] sm:$0xff]
      %v507 = vld [vmem:[%s443] sm:$0xff]
      %v508 = vld [vmem:[%s443 + $0x8] sm:$0xff]
      %v509 = vmax.f32 %v505, %v507
      %v510 = vmax.f32 %v506, %v508
      %v511 = vld [vmem:[%s455] sm:$0xff]
      %v512 = vld [vmem:[%s455 + $0x8] sm:$0xff]
      %v513 = vmax.f32 %v509, %v511
      %v514 = vmax.f32 %v510, %v512
      %v515 = vld [vmem:[%s467] sm:$0xff]
      %v516 = vld [vmem:[%s467 + $0x8] sm:$0xff]
      %v517 = vmax.f32 %v513, %v515
      %v518 = vmax.f32 %v514, %v516
      %v519 = vld [vmem:[%s479] sm:$0xff]
      %v520 = vld [vmem:[%s479 + $0x8] sm:$0xff]
      %v521 = vmax.f32 %v517, %v519
      %v522 = vmax.f32 %v518, %v520
      %v523 = vld [vmem:[%s491] sm:$0xff]
      %v524 = vld [vmem:[%s491 + $0x8] sm:$0xff]
      %v525 = vsub.f32 %v523, %v521
      %v526 = vsub.f32 %v524, %v522
      %v527 = vand.u32 2147483647, %v525
      %v528 = vand.u32 2147483647, %v526
      %s529 = sadd.s32 %s21, %s22
      %s530 = smul.u32 %s529, 16
      %v531 = vlaneseq
      %v532 = vshrl.u32 %v531, 7
      %v533 = vadd.s32 %v532, 8
      %v534 = vstv %s530
      %v535 = vadd.s32 %v534, %v532
      %v536 = vadd.s32 %v534, %v533
      %vm537 = vcmp.lt.s32.totalorder %v535, 16
      %vm538 = vcmp.lt.s32.totalorder %v536, 16
      %v539 = vsel %vm537, %v527, 0.0
      %v540 = vsel %vm538, %v528, 0.0
      %v541 = vld [vmem:[#allocation2] sm:$0xff]
      %v542 = vadd.f32 %v539, %v540
      %v543 = vadd.f32 %v541, %v542
      %544 = vst [vmem:[#allocation2] sm:$0xff] %v543
      // Predicated region
      $region49: #{l_intensity.1} parent=43 // pred_check
        %p545 = pneg %p500
      $region50: #{l_intensity.1} parent=43 // pred_check_branch
        %547 = sbr.rel (%p545) target = $region52
      $region51: #{l_intensity.1} parent=43 // pred_region
        %v548 = vld [vmem:[#allocation2] sm:$0xff]
        %549 = vst [vmem:[%s499] sm:$0xff] %v548
      $region52: #{l_intensity.1} parent=43 // pred_fallthru
        _
      %p550 = scmp.lt.s32.totalorder %s21, 1
      %s551 = scalar_select %p550, %s21, 1
      %s552 = smul.addr %s551, 8
      %s553 = scalar_lea.vmem %s6, %s552
      // Predicated region
      $region53: #{l_intensity.1} parent=43 // pred_check
        %p554 = pneg %p239
      $region54: #{l_intensity.1} parent=43 // pred_check_branch
        %556 = sbr.rel (%p554) target = $region56
      $region55: #{l_intensity.1} parent=43 // pred_region
        _
      $region56: #{l_intensity.1} parent=43 // pred_fallthru
        _
    $region44: #{l_intensity.1} parent=5 // pred_fallthru
      _
    %p557 = scmp.le.s32.totalorder 2, %s12
    // Predicated region
    $region57: #{l_intensity.1} parent=5 // pred_check
      %p558 = pneg %p557
    $region58: #{l_intensity.1} parent=5 // pred_check_branch
      %560 = sbr.rel (%p558) target = $region60
    $region59: #{l_intensity.1} parent=5 // pred_region
      %s561 = ssub.s32 %s12, 2
      // Predicated region
      $region61: #{l_intensity.1} parent=59 // pred_check
        %p562 = pneg %p245
      $region62: #{l_intensity.1} parent=59 // pred_check_branch
        %564 = sbr.rel (%p562) target = $region64
      $region63: #{l_intensity.1} parent=59 // pred_region
        %p565 = scmp.lt.s32.totalorder %s23, 1
        %s566 = scalar_select %p565, %s23, 1
        %s567 = smul.addr %s566, 8
        %s568 = scalar_lea.vmem %s6, %s567
      $region64: #{l_intensity.1} parent=59 // pred_fallthru
        _
    $region60: #{l_intensity.1} parent=5 // pred_fallthru
      _
  $region6: #{l_intensity.1} parent=0 // loop_footer
    %s16 = sadd.s32 1, %s12
  $region7: #{l_intensity.1} parent=0 // loop_footer_branch
    %11 = sbr.rel target = $region3
  $region8: #{l_intensity.1} parent=0 // loop_exit
    _

</llo_original>
